<compile_context>
chip_gen: v7x
topology: tpu7x:2x2x1
jax: 0.10.0
libtpu: 0.0.40
codegen_flags: <defaults>
</compile_context>

<pallas_src>
import jax
import jax.numpy as jnp
import numpy as np
from jax.experimental import pallas as pl
from jax.experimental.pallas import tpu as pltpu

WEIGHT_DTYPE = jnp.bfloat16  # bf16 weight storage; f32 accumulation on the MXU


# ----------------------------------------------------------------------------
# Fused encoder kernel: all BasicLayers applied to one (C, tile_n) tile.
# BasicLayer:  out = ReLU( W2 @ ReLU(W1 @ x + b1) + W3 @ x + b23 )
# (BN already folded into W*/b*; W1 and W3 are stacked into W13.)
# ----------------------------------------------------------------------------
def _make_encoder_kernel(num_layers):
    def kernel(*refs):
        x_ref = refs[0]
        out_ref = refs[-1]
        x = x_ref[...].astype(jnp.float32)                       # (d_in, tile_n)
        for l in range(num_layers):
            w13, b1, w2, b23 = refs[1 + 4 * l: 5 + 4 * l]
            d_out = b1.shape[0]                                   # static
            xc = x.astype(w13.dtype)                              # bf16 for MXU
            # mlp1.conv1 and mlp2.conv share the same input -> one stacked matmul.
            h13 = jnp.dot(w13[...], xc, preferred_element_type=jnp.float32)
            h1 = jnp.maximum(h13[:d_out] + b1[...], 0.0)          # conv1+BN1+ReLU
            h3 = h13[d_out:]                                      # shortcut conv+BN
            h2 = jnp.dot(w2[...], h1.astype(w2.dtype),            # conv2+BN2
                         preferred_element_type=jnp.float32)
            # residual add + ReLU (f32 epilogue — v5e-safe)
            x = jnp.maximum(h2 + h3 + b23[...], 0.0)
        out_ref[...] = x.astype(out_ref.dtype)
    return kernel


def pointnet_v01_encoder(x_ncw, params, *, tile_n=512):
    """x_ncw: (B, d_in, N) float32 (PyTorch NCW). Returns (B, d_last, N) f32."""
    B, C, N = x_ncw.shape
    layers = params["layers"]
    d_last = layers[-1]["w2"].shape[0]

    # Clamp tile to the 128-aligned point count; pad the tail tile.
    tile_n = max(128, min(tile_n, pl.cdiv(N, 128) * 128))
    n_pad = pl.cdiv(N, tile_n) * tile_n
    if n_pad != N:
        x_ncw = jnp.pad(x_ncw, ((0, 0), (0, 0), (0, n_pad - N)))
    n_tiles = n_pad // tile_n

    def const_spec(shape):
        # Grid-invariant parameter block (full array, constant index_map):
        # the pipeline keeps it resident and does not re-DMA it per step.
        return pl.BlockSpec(shape, lambda b, j: (0, 0))

    in_specs = [pl.BlockSpec((None, C, tile_n), lambda b, j: (b, 0, j))]
    flat_params = []
    for p in layers:
        two_dout, d_in = p["w13"].shape
        d_out = two_dout // 2
        in_specs += [
            const_spec((2 * d_out, d_in)),  # w13 = [W1*s1 ; W3*s3]
            const_spec((d_out, 1)),         # b1
            const_spec((d_out, d_out)),     # w2 (BN2 folded)
            const_spec((d_out, 1)),         # b23 = b2 + b3
        ]
        flat_params += [p["w13"], p["b1"], p["w2"], p["b23"]]

    out = pl.pallas_call(
        _make_encoder_kernel(len(layers)),
        out_shape=jax.ShapeDtypeStruct((B, d_last, n_pad), jnp.float32),
        grid=(B, n_tiles),
        in_specs=in_specs,
        out_specs=pl.BlockSpec((None, d_last, tile_n), lambda b, j: (b, 0, j)),
        compiler_params=pltpu.CompilerParams(
            dimension_semantics=("parallel", "parallel"),
            vmem_limit_bytes=48 * 1024 * 1024),
    )(x_ncw, *flat_params)

    if n_pad != N:
        out = out[:, :, :N]
    return out


# ----------------------------------------------------------------------------
# Deterministic parameter init: Conv1d(k=1, bias=False) + eval-mode BN,
# with BN folded into the conv weights / biases at init time and the two
# input-consuming convs stacked into one weight matrix.
# ----------------------------------------------------------------------------
def _bn_params(key, d_out, eps=1e-5):
    kg, kb, km, kv = jax.random.split(key, 4)
    gamma = 1.0 + 0.1 * jax.random.normal(kg, (d_out, 1), jnp.float32)
    beta = 0.1 * jax.random.normal(kb, (d_out, 1), jnp.float32)
    mean = 0.1 * jax.random.normal(km, (d_out, 1), jnp.float32)
    var = jnp.abs(1.0 + 0.1 * jax.random.normal(kv, (d_out, 1), jnp.float32))
    scale = gamma * jax.lax.rsqrt(var + eps)
    bias = beta - mean * scale
    return scale, bias


def init_basic_layer(key, d_in, d_out):
    k = jax.random.split(key, 6)
    w1 = jax.random.normal(k[0], (d_out, d_in), jnp.float32) * np.sqrt(2.0 / d_in)
    w2 = jax.random.normal(k[1], (d_out, d_out), jnp.float32) * np.sqrt(2.0 / d_out)
    w3 = jax.random.normal(k[2], (d_out, d_in), jnp.float32) * np.sqrt(2.0 / d_in)
    s1, b1 = _bn_params(k[3], d_out)
    s2, b2 = _bn_params(k[4], d_out)
    s3, b3 = _bn_params(k[5], d_out)
    # Fold BN scale into the conv output channels; stack the two convs that
    # read the layer input; merge residual-branch biases.
    w13 = jnp.concatenate([w1 * s1, w3 * s3], axis=0)
    return dict(
        w13=w13.astype(WEIGHT_DTYPE),
        b1=b1.astype(jnp.float32),
        w2=(w2 * s2).astype(WEIGHT_DTYPE),
        b23=(b2 + b3).astype(jnp.float32),
    )


def init_params(key, d_in, d_feats):
    keys = jax.random.split(key, len(d_feats))
    layers, prev = [], d_in
    for i, d in enumerate(d_feats):
        layers.append(init_basic_layer(keys[i], prev, d))
        prev = d
    return dict(layers=layers)


# ----------------------------------------------------------------------------
# Plain-JAX reference (mirrors the kernel's bf16 casts) for correctness check.
# ----------------------------------------------------------------------------
def _ref_forward(x_ncw, params):
    hp = jax.lax.Precision.HIGHEST
    x = x_ncw.astype(jnp.float32)                               # (B, C, N)
    for p in params["layers"]:
        wdt = p["w13"].dtype
        d_out = p["w2"].shape[0]
        xc = x.astype(wdt).astype(jnp.float32)
        w13 = p["w13"].astype(jnp.float32)
        w1, w3 = w13[:d_out], w13[d_out:]
        w2 = p["w2"].astype(jnp.float32)
        h1 = jnp.einsum("oc,bcn->bon", w1, xc, precision=hp) + p["b1"]
        h1 = jnp.maximum(h1, 0.0)
        h2 = jnp.einsum("oc,bcn->bon", w2,
                        h1.astype(wdt).astype(jnp.float32), precision=hp)
        h3 = jnp.einsum("oc,bcn->bon", w3, xc, precision=hp)
        x = jnp.maximum(h2 + h3 + p["b23"], 0.0)
    return x


if __name__ == "__main__":
    # Small shapes consistent with the module: point cloud (B, d_in, N) in NCW.
    # N=200 is deliberately not a multiple of 128 to exercise the tail padding,
    # and tile_n=128 exercises a multi-tile grid; production default is 512.
    B, d_in, N = 2, 3, 200
    d_feats = [32, 64]

    key = jax.random.PRNGKey(0)
    kx, kp = jax.random.split(key)
    x_ncw = jax.random.normal(kx, (B, d_in, N), jnp.float32)
    params = init_params(kp, d_in, d_feats)

    feats = pointnet_v01_encoder(x_ncw, params, tile_n=128)
    feats = jax.block_until_ready(feats)
    assert feats.shape == (B, d_feats[-1], N)

    ref = _ref_forward(x_ncw, params)
    np.testing.assert_allclose(np.asarray(feats), np.asarray(ref),
                               rtol=2e-2, atol=2e-2)
    print("KERNEL_OK")
</pallas_src>

<mosaic_0001>
module attributes {stable_mosaic.version = 11 : i64} {
  func.func @kernel(%arg0: i32, %arg1: i32, %arg2: memref<1x3x128xf32, #tpu.memory_space<vmem>>, %arg3: memref<64x3xbf16, #tpu.memory_space<vmem>>, %arg4: memref<32x1xf32, #tpu.memory_space<vmem>>, %arg5: memref<32x32xbf16, #tpu.memory_space<vmem>>, %arg6: memref<32x1xf32, #tpu.memory_space<vmem>>, %arg7: memref<128x32xbf16, #tpu.memory_space<vmem>>, %arg8: memref<64x1xf32, #tpu.memory_space<vmem>>, %arg9: memref<64x64xbf16, #tpu.memory_space<vmem>>, %arg10: memref<64x1xf32, #tpu.memory_space<vmem>>, %arg11: memref<1x64x128xf32, #tpu.memory_space<vmem>>) attributes {dimension_semantics = [#tpu.dimension_semantics<parallel>, #tpu.dimension_semantics<parallel>], iteration_bounds = array<i64: 2, 2>, scalar_prefetch = 0 : i64, scratch_operands = 0 : i64, tpu.core_type = #tpu.core_type<tc>, window_params = [{transform_indices = @transform_0, window_bounds = array<i64: 1, 3, 128>}, {pipeline_mode = #tpu.pipeline_mode<synchronous>, transform_indices = @transform_1, window_bounds = array<i64: 64, 3>}, {pipeline_mode = #tpu.pipeline_mode<synchronous>, transform_indices = @transform_2, window_bounds = array<i64: 32, 1>}, {pipeline_mode = #tpu.pipeline_mode<synchronous>, transform_indices = @transform_3, window_bounds = array<i64: 32, 32>}, {pipeline_mode = #tpu.pipeline_mode<synchronous>, transform_indices = @transform_4, window_bounds = array<i64: 32, 1>}, {pipeline_mode = #tpu.pipeline_mode<synchronous>, transform_indices = @transform_5, window_bounds = array<i64: 128, 32>}, {pipeline_mode = #tpu.pipeline_mode<synchronous>, transform_indices = @transform_6, window_bounds = array<i64: 64, 1>}, {pipeline_mode = #tpu.pipeline_mode<synchronous>, transform_indices = @transform_7, window_bounds = array<i64: 64, 64>}, {pipeline_mode = #tpu.pipeline_mode<synchronous>, transform_indices = @transform_8, window_bounds = array<i64: 64, 1>}, {transform_indices = @transform_9, window_bounds = array<i64: 1, 64, 128>}]} {
    %c0 = arith.constant 0 : index
    %c0_0 = arith.constant 0 : index
    %c0_1 = arith.constant 0 : index
    %0 = vector.load %arg2[%c0, %c0_0, %c0_1] : memref<1x3x128xf32, #tpu.memory_space<vmem>>, vector<1x3x128xf32>
    %1 = vector.shape_cast %0 : vector<1x3x128xf32> to vector<3x128xf32>
    %2 = arith.truncf %1 : vector<3x128xf32> to vector<3x128xbf16>
    %c0_2 = arith.constant 0 : index
    %c0_3 = arith.constant 0 : index
    %3 = vector.load %arg3[%c0_2, %c0_3] : memref<64x3xbf16, #tpu.memory_space<vmem>>, vector<64x3xbf16>
    %cst = arith.constant dense<0.000000e+00> : vector<64x128xf32>
    %4 = tpu.matmul %3, %2, %cst {dimension_numbers = #tpu.dot_dimension_numbers<[1], [0], [0], [1], [0, 0, 1, 1], [], []>} : vector<64x3xbf16>, vector<3x128xbf16>, vector<64x128xf32> -> vector<64x128xf32>
    %5 = vector.extract_strided_slice %4 {offsets = [0, 0], sizes = [32, 128], strides = [1, 1]} : vector<64x128xf32> to vector<32x128xf32>
    %c0_4 = arith.constant 0 : index
    %c0_5 = arith.constant 0 : index
    %6 = vector.load %arg4[%c0_4, %c0_5] : memref<32x1xf32, #tpu.memory_space<vmem>>, vector<32x1xf32>
    %7 = vector.broadcast %6 : vector<32x1xf32> to vector<32x128xf32>
    %8 = arith.addf %5, %7 : vector<32x128xf32>
    %cst_6 = arith.constant 0.000000e+00 : f32
    %9 = vector.broadcast %cst_6 : f32 to vector<32x128xf32>
    %10 = arith.maximumf %8, %9 : vector<32x128xf32>
    %11 = vector.extract_strided_slice %4 {offsets = [32, 0], sizes = [32, 128], strides = [1, 1]} : vector<64x128xf32> to vector<32x128xf32>
    %c0_7 = arith.constant 0 : index
    %c0_8 = arith.constant 0 : index
    %12 = vector.load %arg5[%c0_7, %c0_8] : memref<32x32xbf16, #tpu.memory_space<vmem>>, vector<32x32xbf16>
    %13 = arith.truncf %10 : vector<32x128xf32> to vector<32x128xbf16>
    %cst_9 = arith.constant dense<0.000000e+00> : vector<32x128xf32>
    %14 = tpu.matmul %12, %13, %cst_9 {dimension_numbers = #tpu.dot_dimension_numbers<[1], [0], [0], [1], [0, 0, 1, 1], [], []>} : vector<32x32xbf16>, vector<32x128xbf16>, vector<32x128xf32> -> vector<32x128xf32>
    %15 = arith.addf %14, %11 : vector<32x128xf32>
    %c0_10 = arith.constant 0 : index
    %c0_11 = arith.constant 0 : index
    %16 = vector.load %arg6[%c0_10, %c0_11] : memref<32x1xf32, #tpu.memory_space<vmem>>, vector<32x1xf32>
    %17 = vector.broadcast %16 : vector<32x1xf32> to vector<32x128xf32>
    %18 = arith.addf %15, %17 : vector<32x128xf32>
    %cst_12 = arith.constant 0.000000e+00 : f32
    %19 = vector.broadcast %cst_12 : f32 to vector<32x128xf32>
    %20 = arith.maximumf %18, %19 : vector<32x128xf32>
    %21 = arith.truncf %20 : vector<32x128xf32> to vector<32x128xbf16>
    %c0_13 = arith.constant 0 : index
    %c0_14 = arith.constant 0 : index
    %22 = vector.load %arg7[%c0_13, %c0_14] : memref<128x32xbf16, #tpu.memory_space<vmem>>, vector<128x32xbf16>
    %cst_15 = arith.constant dense<0.000000e+00> : vector<128x128xf32>
    %23 = tpu.matmul %22, %21, %cst_15 {dimension_numbers = #tpu.dot_dimension_numbers<[1], [0], [0], [1], [0, 0, 1, 1], [], []>} : vector<128x32xbf16>, vector<32x128xbf16>, vector<128x128xf32> -> vector<128x128xf32>
    %24 = vector.extract_strided_slice %23 {offsets = [0, 0], sizes = [64, 128], strides = [1, 1]} : vector<128x128xf32> to vector<64x128xf32>
    %c0_16 = arith.constant 0 : index
    %c0_17 = arith.constant 0 : index
    %25 = vector.load %arg8[%c0_16, %c0_17] : memref<64x1xf32, #tpu.memory_space<vmem>>, vector<64x1xf32>
    %26 = vector.broadcast %25 : vector<64x1xf32> to vector<64x128xf32>
    %27 = arith.addf %24, %26 : vector<64x128xf32>
    %cst_18 = arith.constant 0.000000e+00 : f32
    %28 = vector.broadcast %cst_18 : f32 to vector<64x128xf32>
    %29 = arith.maximumf %27, %28 : vector<64x128xf32>
    %30 = vector.extract_strided_slice %23 {offsets = [64, 0], sizes = [64, 128], strides = [1, 1]} : vector<128x128xf32> to vector<64x128xf32>
    %c0_19 = arith.constant 0 : index
    %c0_20 = arith.constant 0 : index
    %31 = vector.load %arg9[%c0_19, %c0_20] : memref<64x64xbf16, #tpu.memory_space<vmem>>, vector<64x64xbf16>
    %32 = arith.truncf %29 : vector<64x128xf32> to vector<64x128xbf16>
    %cst_21 = arith.constant dense<0.000000e+00> : vector<64x128xf32>
    %33 = tpu.matmul %31, %32, %cst_21 {dimension_numbers = #tpu.dot_dimension_numbers<[1], [0], [0], [1], [0, 0, 1, 1], [], []>} : vector<64x64xbf16>, vector<64x128xbf16>, vector<64x128xf32> -> vector<64x128xf32>
    %34 = arith.addf %33, %30 : vector<64x128xf32>
    %c0_22 = arith.constant 0 : index
    %c0_23 = arith.constant 0 : index
    %35 = vector.load %arg10[%c0_22, %c0_23] : memref<64x1xf32, #tpu.memory_space<vmem>>, vector<64x1xf32>
    %36 = vector.broadcast %35 : vector<64x1xf32> to vector<64x128xf32>
    %37 = arith.addf %34, %36 : vector<64x128xf32>
    %cst_24 = arith.constant 0.000000e+00 : f32
    %38 = vector.broadcast %cst_24 : f32 to vector<64x128xf32>
    %39 = arith.maximumf %37, %38 : vector<64x128xf32>
    %c0_25 = arith.constant 0 : index
    %c0_26 = arith.constant 0 : index
    %c0_27 = arith.constant 0 : index
    %40 = vector.load %arg11[%c0_25, %c0_26, %c0_27] : memref<1x64x128xf32, #tpu.memory_space<vmem>>, vector<1x64x128xf32>
    %41 = vector.shape_cast %40 : vector<1x64x128xf32> to vector<64x128xf32>
    %42 = vector.shape_cast %39 : vector<64x128xf32> to vector<1x64x128xf32>
    tpu.vector_store %arg11[%c0_25, %c0_26, %c0_27], %42 {strides = array<i32>} : memref<1x64x128xf32, #tpu.memory_space<vmem>>, vector<1x64x128xf32>,
    return
  }
  func.func @transform_0(%arg0: i32, %arg1: i32) -> (i32, i32, i32) {
    %c0_i32 = arith.constant 0 : i32
    %c0_i32_0 = arith.constant 0 : i32
    return %arg0, %c0_i32, %arg1 : i32, i32, i32
  }
  func.func @transform_1(%arg0: i32, %arg1: i32) -> (i32, i32) {
    %c0_i32 = arith.constant 0 : i32
    %c0_i32_0 = arith.constant 0 : i32
    %c0_i32_1 = arith.constant 0 : i32
    return %c0_i32, %c0_i32_0 : i32, i32
  }
  func.func @transform_2(%arg0: i32, %arg1: i32) -> (i32, i32) {
    %c0_i32 = arith.constant 0 : i32
    %c0_i32_0 = arith.constant 0 : i32
    %c0_i32_1 = arith.constant 0 : i32
    return %c0_i32, %c0_i32_0 : i32, i32
  }
  func.func @transform_3(%arg0: i32, %arg1: i32) -> (i32, i32) {
    %c0_i32 = arith.constant 0 : i32
    %c0_i32_0 = arith.constant 0 : i32
    %c0_i32_1 = arith.constant 0 : i32
    return %c0_i32, %c0_i32_0 : i32, i32
  }
  func.func @transform_4(%arg0: i32, %arg1: i32) -> (i32, i32) {
    %c0_i32 = arith.constant 0 : i32
    %c0_i32_0 = arith.constant 0 : i32
    %c0_i32_1 = arith.constant 0 : i32
    return %c0_i32, %c0_i32_0 : i32, i32
  }
  func.func @transform_5(%arg0: i32, %arg1: i32) -> (i32, i32) {
    %c0_i32 = arith.constant 0 : i32
    %c0_i32_0 = arith.constant 0 : i32
    %c0_i32_1 = arith.constant 0 : i32
    return %c0_i32, %c0_i32_0 : i32, i32
  }
  func.func @transform_6(%arg0: i32, %arg1: i32) -> (i32, i32) {
    %c0_i32 = arith.constant 0 : i32
    %c0_i32_0 = arith.constant 0 : i32
    %c0_i32_1 = arith.constant 0 : i32
    return %c0_i32, %c0_i32_0 : i32, i32
  }
  func.func @transform_7(%arg0: i32, %arg1: i32) -> (i32, i32) {
    %c0_i32 = arith.constant 0 : i32
    %c0_i32_0 = arith.constant 0 : i32
    %c0_i32_1 = arith.constant 0 : i32
    return %c0_i32, %c0_i32_0 : i32, i32
  }
  func.func @transform_8(%arg0: i32, %arg1: i32) -> (i32, i32) {
    %c0_i32 = arith.constant 0 : i32
    %c0_i32_0 = arith.constant 0 : i32
    %c0_i32_1 = arith.constant 0 : i32
    return %c0_i32, %c0_i32_0 : i32, i32
  }
  func.func @transform_9(%arg0: i32, %arg1: i32) -> (i32, i32, i32) {
    %c0_i32 = arith.constant 0 : i32
    %c0_i32_0 = arith.constant 0 : i32
    return %arg0, %c0_i32, %arg1 : i32, i32, i32
  }
}

</mosaic_0001>

<llo_original>
// kernel: tpu_custom_call.1
$region0: #{tpu_custom_call.1}
  #allocation0 [shape = 'u32[]', space=smem, size = 0x4, offset = 0x4, fixed_abs, tag = 'smem constant byte address 0x4 - core index']
  #allocation1 [shape = 'u32[144,128]{1,0:T(1,128)}', space=vmem, size = 0x12000, scoped, tag = 'internal scratch']
  %s0 = inlined_call_operand.vmem [shape: f32[2,3,256], index: 0, kind: input, shape index: {}]
  %s1 = inlined_call_operand.vmem [shape: bf16[64,3], index: 1, kind: input, shape index: {}]
  %s2 = inlined_call_operand.vmem [shape: f32[32,1], index: 2, kind: input, shape index: {}]
  %s3 = inlined_call_operand.vmem [shape: bf16[32,32], index: 3, kind: input, shape index: {}]
  %s4 = inlined_call_operand.vmem [shape: f32[32,1], index: 4, kind: input, shape index: {}]
  %s5 = inlined_call_operand.vmem [shape: bf16[128,32], index: 5, kind: input, shape index: {}]
  %s6 = inlined_call_operand.vmem [shape: f32[64,1], index: 6, kind: input, shape index: {}]
  %s7 = inlined_call_operand.vmem [shape: bf16[64,64], index: 7, kind: input, shape index: {}]
  %s8 = inlined_call_operand.vmem [shape: f32[64,1], index: 8, kind: input, shape index: {}]
  %s9 = inlined_call_operand.hbm [shape: f32[2,64,256], index: 9, kind: output, shape index: {}]
  %s10 = sld [smem:[#allocation0]]
  $region69: #{tpu_custom_call.1} parent=0
    _
  %s12 = ssub.s32 1, %s10
  %s13 = scalar_select 0, %s12, %s10
  $region1: #{tpu_custom_call.1} parent=0
    #allocation2 [shape = 'u8[65536]{0}', space=vmem, size = 0x10000, scoped, tag = 'output window, operand 0']
    #allocation3 [shape = 's32[2]{0}', space=sflag, size = 0x8, scoped, tag = 'scoped memory for tpu_custom_call.1']
    %14 = vsyncpa [#allocation3], 0
    %s15 = scalar_lea.sflag [#allocation3], 1
    %16 = vsyncpa %s15, 0
    loop: start=0, step=1, limit=6
    $region2: #{tpu_custom_call.1} parent=1 // loop_pre_header
      _
    $region3: #{tpu_custom_call.1} parent=1 // loop_header
      %s18 = sphi 0, %s22
      %p19 = scmp.ge.s32.totalorder %s18, 6
      %s25 = sphi 0, %s37
      %s26 = sphi 0, %s33
      %s27 = sphi 0, %s25
      %s28 = sphi 0, %s26
      %s29 = sphi 0, %s27
      %s30 = sphi 0, %s28
      %s42 = sphi 0, %s44
      %s45 = sphi 0, %s42
      %s46 = sphi 0, %s45
      %s62 = sphi 0, %s46
      %s66 = sphi 0, %s66
      %s68 = sphi 0, %s66
      %s69 = sphi 0, %s68
      %s83 = sphi 0, %s69
      %s87 = sphi 0, %s87
      %s89 = sphi 0, %s87
      %s90 = sphi 0, %s89
      %s104 = sphi 0, %s90
      %s108 = sphi 0, %s108
      %s110 = sphi 0, %s108
      %s111 = sphi 0, %s110
      %s125 = sphi 0, %s111
      %s129 = sphi 0, %s129
      %s131 = sphi 0, %s129
      %s132 = sphi 0, %s131
      %s146 = sphi 0, %s132
      %s150 = sphi 0, %s150
      %s152 = sphi 0, %s150
      %s153 = sphi 0, %s152
      %s167 = sphi 0, %s153
      %s171 = sphi 0, %s171
      %s173 = sphi 0, %s171
      %s174 = sphi 0, %s173
      %s188 = sphi 0, %s174
      %s192 = sphi 0, %s192
      %s194 = sphi 0, %s192
      %s195 = sphi 0, %s194
      %s209 = sphi 0, %s195
      %s213 = sphi 0, %s213
      %s215 = sphi 0, %s213
      %s216 = sphi 0, %s215
      %s230 = sphi 0, %s216
      %s238 = sphi 0, %s240
      %s241 = sphi 0, %s238
      %s242 = sphi 0, %s241
      %s258 = sphi 0, %s242
    $region4: #{tpu_custom_call.1} parent=1 // loop_header_branch
      %21 = sbr.rel (%p19) target = $region8
    $region5: #{tpu_custom_call.1} parent=1 // loop_body
      %s23 = ssub.s32 %s18, 1
      %s24 = ssub.s32 %s18, 2
      %s31 = sadd.s32 1, %s26
      %p32 = scmp.ge.s32.totalorder %s31, 2
      %s33 = scalar_select %p32, 0, %s31
      %s34 = sadd.s32 1, %s25
      %s35 = scalar_select %p32, %s34, %s25
      %p36 = scmp.ge.s32.totalorder %s35, 2
      %s37 = scalar_select %p36, 0, %s35
      %s38 = ssub.s32 %s25, %s37
      %s39 = ssub.s32 %s26, %s33
      %s40 = sor.u32 %s38, %s39
      %p41 = scmp.eq.s32.totalorder %s40, 0
      %s43 = sadd.s32 %s42, 1
      %s44 = scalar_select %p41, %s42, %s43
      %p47 = pneg %p41
      %p48 = scmp.eq.s32.totalorder %s18, 3
      %p49 = por %p47, %p48
      %p50 = scmp.ne.s32.totalorder %s42, %s45
      %p51 = scmp.eq.s32.totalorder %s18, 0
      %p52 = por %p50, %p51
      %p53 = scmp.ne.s32.totalorder %s42, %s45
      %p54 = scmp.eq.s32.totalorder %s23, 3
      %p55 = por %p53, %p54
      %p56 = scmp.ne.s32.totalorder %s45, %s46
      %p57 = scmp.eq.s32.totalorder %s23, 0
      %p58 = por %p56, %p57
      %p59 = scmp.ne.s32.totalorder %s45, %s46
      %p60 = scmp.eq.s32.totalorder %s24, 3
      %p61 = por %p59, %p60
      %p63 = scmp.ne.s32.totalorder %s46, %s62
      %p64 = scmp.eq.s32.totalorder %s24, 0
      %p65 = por %p63, %p64
      %s67 = sadd.s32 %s66, 1
      %p70 = scmp.eq.s32.totalorder %s18, 3
      %p71 = scmp.ne.s32.totalorder %s66, %s68
      %p72 = scmp.eq.s32.totalorder %s18, 0
      %p73 = por %p71, %p72
      %p74 = scmp.ne.s32.totalorder %s66, %s68
      %p75 = scmp.eq.s32.totalorder %s23, 3
      %p76 = por %p74, %p75
      %p77 = scmp.ne.s32.totalorder %s68, %s69
      %p78 = scmp.eq.s32.totalorder %s23, 0
      %p79 = por %p77, %p78
      %p80 = scmp.ne.s32.totalorder %s68, %s69
      %p81 = scmp.eq.s32.totalorder %s24, 3
      %p82 = por %p80, %p81
      %p84 = scmp.ne.s32.totalorder %s69, %s83
      %p85 = scmp.eq.s32.totalorder %s24, 0
      %p86 = por %p84, %p85
      %s88 = sadd.s32 %s87, 1
      %p91 = scmp.eq.s32.totalorder %s18, 3
      %p92 = scmp.ne.s32.totalorder %s87, %s89
      %p93 = scmp.eq.s32.totalorder %s18, 0
      %p94 = por %p92, %p93
      %p95 = scmp.ne.s32.totalorder %s87, %s89
      %p96 = scmp.eq.s32.totalorder %s23, 3
      %p97 = por %p95, %p96
      %p98 = scmp.ne.s32.totalorder %s89, %s90
      %p99 = scmp.eq.s32.totalorder %s23, 0
      %p100 = por %p98, %p99
      %p101 = scmp.ne.s32.totalorder %s89, %s90
      %p102 = scmp.eq.s32.totalorder %s24, 3
      %p103 = por %p101, %p102
      %p105 = scmp.ne.s32.totalorder %s90, %s104
      %p106 = scmp.eq.s32.totalorder %s24, 0
      %p107 = por %p105, %p106
      %s109 = sadd.s32 %s108, 1
      %p112 = scmp.eq.s32.totalorder %s18, 3
      %p113 = scmp.ne.s32.totalorder %s108, %s110
      %p114 = scmp.eq.s32.totalorder %s18, 0
      %p115 = por %p113, %p114
      %p116 = scmp.ne.s32.totalorder %s108, %s110
      %p117 = scmp.eq.s32.totalorder %s23, 3
      %p118 = por %p116, %p117
      %p119 = scmp.ne.s32.totalorder %s110, %s111
      %p120 = scmp.eq.s32.totalorder %s23, 0
      %p121 = por %p119, %p120
      %p122 = scmp.ne.s32.totalorder %s110, %s111
      %p123 = scmp.eq.s32.totalorder %s24, 3
      %p124 = por %p122, %p123
      %p126 = scmp.ne.s32.totalorder %s111, %s125
      %p127 = scmp.eq.s32.totalorder %s24, 0
      %p128 = por %p126, %p127
      %s130 = sadd.s32 %s129, 1
      %p133 = scmp.eq.s32.totalorder %s18, 3
      %p134 = scmp.ne.s32.totalorder %s129, %s131
      %p135 = scmp.eq.s32.totalorder %s18, 0
      %p136 = por %p134, %p135
      %p137 = scmp.ne.s32.totalorder %s129, %s131
      %p138 = scmp.eq.s32.totalorder %s23, 3
      %p139 = por %p137, %p138
      %p140 = scmp.ne.s32.totalorder %s131, %s132
      %p141 = scmp.eq.s32.totalorder %s23, 0
      %p142 = por %p140, %p141
      %p143 = scmp.ne.s32.totalorder %s131, %s132
      %p144 = scmp.eq.s32.totalorder %s24, 3
      %p145 = por %p143, %p144
      %p147 = scmp.ne.s32.totalorder %s132, %s146
      %p148 = scmp.eq.s32.totalorder %s24, 0
      %p149 = por %p147, %p148
      %s151 = sadd.s32 %s150, 1
      %p154 = scmp.eq.s32.totalorder %s18, 3
      %p155 = scmp.ne.s32.totalorder %s150, %s152
      %p156 = scmp.eq.s32.totalorder %s18, 0
      %p157 = por %p155, %p156
      %p158 = scmp.ne.s32.totalorder %s150, %s152
      %p159 = scmp.eq.s32.totalorder %s23, 3
      %p160 = por %p158, %p159
      %p161 = scmp.ne.s32.totalorder %s152, %s153
      %p162 = scmp.eq.s32.totalorder %s23, 0
      %p163 = por %p161, %p162
      %p164 = scmp.ne.s32.totalorder %s152, %s153
      %p165 = scmp.eq.s32.totalorder %s24, 3
      %p166 = por %p164, %p165
      %p168 = scmp.ne.s32.totalorder %s153, %s167
      %p169 = scmp.eq.s32.totalorder %s24, 0
      %p170 = por %p168, %p169
      %s172 = sadd.s32 %s171, 1
      %p175 = scmp.eq.s32.totalorder %s18, 3
      %p176 = scmp.ne.s32.totalorder %s171, %s173
      %p177 = scmp.eq.s32.totalorder %s18, 0
      %p178 = por %p176, %p177
      %p179 = scmp.ne.s32.totalorder %s171, %s173
      %p180 = scmp.eq.s32.totalorder %s23, 3
      %p181 = por %p179, %p180
      %p182 = scmp.ne.s32.totalorder %s173, %s174
      %p183 = scmp.eq.s32.totalorder %s23, 0
      %p184 = por %p182, %p183
      %p185 = scmp.ne.s32.totalorder %s173, %s174
      %p186 = scmp.eq.s32.totalorder %s24, 3
      %p187 = por %p185, %p186
      %p189 = scmp.ne.s32.totalorder %s174, %s188
      %p190 = scmp.eq.s32.totalorder %s24, 0
      %p191 = por %p189, %p190
      %s193 = sadd.s32 %s192, 1
      %p196 = scmp.eq.s32.totalorder %s18, 3
      %p197 = scmp.ne.s32.totalorder %s192, %s194
      %p198 = scmp.eq.s32.totalorder %s18, 0
      %p199 = por %p197, %p198
      %p200 = scmp.ne.s32.totalorder %s192, %s194
      %p201 = scmp.eq.s32.totalorder %s23, 3
      %p202 = por %p200, %p201
      %p203 = scmp.ne.s32.totalorder %s194, %s195
      %p204 = scmp.eq.s32.totalorder %s23, 0
      %p205 = por %p203, %p204
      %p206 = scmp.ne.s32.totalorder %s194, %s195
      %p207 = scmp.eq.s32.totalorder %s24, 3
      %p208 = por %p206, %p207
      %p210 = scmp.ne.s32.totalorder %s195, %s209
      %p211 = scmp.eq.s32.totalorder %s24, 0
      %p212 = por %p210, %p211
      %s214 = sadd.s32 %s213, 1
      %p217 = scmp.eq.s32.totalorder %s18, 3
      %p218 = scmp.ne.s32.totalorder %s213, %s215
      %p219 = scmp.eq.s32.totalorder %s18, 0
      %p220 = por %p218, %p219
      %p221 = scmp.ne.s32.totalorder %s213, %s215
      %p222 = scmp.eq.s32.totalorder %s23, 3
      %p223 = por %p221, %p222
      %p224 = scmp.ne.s32.totalorder %s215, %s216
      %p225 = scmp.eq.s32.totalorder %s23, 0
      %p226 = por %p224, %p225
      %p227 = scmp.ne.s32.totalorder %s215, %s216
      %p228 = scmp.eq.s32.totalorder %s24, 3
      %p229 = por %p227, %p228
      %p231 = scmp.ne.s32.totalorder %s216, %s230
      %p232 = scmp.eq.s32.totalorder %s24, 0
      %p233 = por %p231, %p232
      %s234 = ssub.s32 %s25, %s37
      %s235 = ssub.s32 %s26, %s33
      %s236 = sor.u32 %s234, %s235
      %p237 = scmp.eq.s32.totalorder %s236, 0
      %s239 = sadd.s32 %s238, 1
      %s240 = scalar_select %p237, %s238, %s239
      %p243 = pneg %p237
      %p244 = scmp.eq.s32.totalorder %s18, 3
      %p245 = por %p243, %p244
      %p246 = scmp.ne.s32.totalorder %s238, %s241
      %p247 = scmp.eq.s32.totalorder %s18, 0
      %p248 = por %p246, %p247
      %p249 = scmp.ne.s32.totalorder %s238, %s241
      %p250 = scmp.eq.s32.totalorder %s23, 3
      %p251 = por %p249, %p250
      %p252 = scmp.ne.s32.totalorder %s241, %s242
      %p253 = scmp.eq.s32.totalorder %s23, 0
      %p254 = por %p252, %p253
      %p255 = scmp.ne.s32.totalorder %s241, %s242
      %p256 = scmp.eq.s32.totalorder %s24, 3
      %p257 = por %p255, %p256
      %p259 = scmp.ne.s32.totalorder %s242, %s258
      %p260 = scmp.eq.s32.totalorder %s24, 0
      %p261 = por %p259, %p260
      %p262 = scmp.le.s32.totalorder 1, %s18
      %p263 = scmp.lt.s32.totalorder %s18, 5
      %p264 = pnand %p262, %p263
      %p265 = pneg %p264
      // Predicated region
      $region9: #{tpu_custom_call.1} parent=5 // pred_check
        _
      $region10: #{tpu_custom_call.1} parent=5 // pred_check_branch
        %267 = sbr.rel (%p264) target = $region12
      $region11: #{tpu_custom_call.1} parent=5 // pred_region
        %s268 = ssub.s32 %s18, 1
        // Predicated region
        $region13: #{tpu_custom_call.1} parent=11 // pred_check
          %p269 = pneg %p79
        $region14: #{tpu_custom_call.1} parent=11 // pred_check_branch
          %271 = sbr.rel (%p269) target = $region16
        $region15: #{tpu_custom_call.1} parent=11 // pred_region
          _
        $region16: #{tpu_custom_call.1} parent=11 // pred_fallthru
          _
        // Predicated region
        $region17: #{tpu_custom_call.1} parent=11 // pred_check
          %p272 = pneg %p100
        $region18: #{tpu_custom_call.1} parent=11 // pred_check_branch
          %274 = sbr.rel (%p272) target = $region20
        $region19: #{tpu_custom_call.1} parent=11 // pred_region
          _
        $region20: #{tpu_custom_call.1} parent=11 // pred_fallthru
          _
        // Predicated region
        $region21: #{tpu_custom_call.1} parent=11 // pred_check
          %p275 = pneg %p121
        $region22: #{tpu_custom_call.1} parent=11 // pred_check_branch
          %277 = sbr.rel (%p275) target = $region24
        $region23: #{tpu_custom_call.1} parent=11 // pred_region
          _
        $region24: #{tpu_custom_call.1} parent=11 // pred_fallthru
          _
        // Predicated region
        $region25: #{tpu_custom_call.1} parent=11 // pred_check
          %p278 = pneg %p142
        $region26: #{tpu_custom_call.1} parent=11 // pred_check_branch
          %280 = sbr.rel (%p278) target = $region28
        $region27: #{tpu_custom_call.1} parent=11 // pred_region
          _
        $region28: #{tpu_custom_call.1} parent=11 // pred_fallthru
          _
        // Predicated region
        $region29: #{tpu_custom_call.1} parent=11 // pred_check
          %p281 = pneg %p163
        $region30: #{tpu_custom_call.1} parent=11 // pred_check_branch
          %283 = sbr.rel (%p281) target = $region32
        $region31: #{tpu_custom_call.1} parent=11 // pred_region
          _
        $region32: #{tpu_custom_call.1} parent=11 // pred_fallthru
          _
        // Predicated region
        $region33: #{tpu_custom_call.1} parent=11 // pred_check
          %p284 = pneg %p184
        $region34: #{tpu_custom_call.1} parent=11 // pred_check_branch
          %286 = sbr.rel (%p284) target = $region36
        $region35: #{tpu_custom_call.1} parent=11 // pred_region
          _
        $region36: #{tpu_custom_call.1} parent=11 // pred_fallthru
          _
        // Predicated region
        $region37: #{tpu_custom_call.1} parent=11 // pred_check
          %p287 = pneg %p205
        $region38: #{tpu_custom_call.1} parent=11 // pred_check_branch
          %289 = sbr.rel (%p287) target = $region40
        $region39: #{tpu_custom_call.1} parent=11 // pred_region
          _
        $region40: #{tpu_custom_call.1} parent=11 // pred_fallthru
          _
        // Predicated region
        $region41: #{tpu_custom_call.1} parent=11 // pred_check
          %p290 = pneg %p226
        $region42: #{tpu_custom_call.1} parent=11 // pred_check_branch
          %292 = sbr.rel (%p290) target = $region44
        $region43: #{tpu_custom_call.1} parent=11 // pred_region
          _
        $region44: #{tpu_custom_call.1} parent=11 // pred_fallthru
          _
      $region12: #{tpu_custom_call.1} parent=5 // pred_fallthru
        _
      %p293 = scmp.lt.s32.totalorder %s18, 4
      // Predicated region
      $region45: #{tpu_custom_call.1} parent=5 // pred_check
        %p294 = pneg %p293
      $region46: #{tpu_custom_call.1} parent=5 // pred_check_branch
        %296 = sbr.rel (%p294) target = $region48
      $region47: #{tpu_custom_call.1} parent=5 // pred_region
        // Predicated region
        $region49: #{tpu_custom_call.1} parent=47 // pred_check
          %p297 = pneg %p52
        $region50: #{tpu_custom_call.1} parent=47 // pred_check_branch
          %299 = sbr.rel (%p297) target = $region52
        $region51: #{tpu_custom_call.1} parent=47 // pred_region
          %p300 = scmp.lt.s32.totalorder %s25, 1
          %s301 = scalar_select %p300, %s25, 1
          %p302 = scmp.lt.s32.totalorder %s26, 1
          %s303 = scalar_select %p302, %s26, 1
          %s304 = smul.addr %s301, 2
          %s305 = sadd.s32 %s303, %s304
          %s306 = smul.addr %s305, 4
          %s307 = scalar_lea.vmem %s0, %s306
        $region52: #{tpu_custom_call.1} parent=47 // pred_fallthru
          _
      $region48: #{tpu_custom_call.1} parent=5 // pred_fallthru
        _
      %p308 = scmp.le.s32.totalorder 1, %s18
      %p309 = scmp.lt.s32.totalorder %s18, 5
      %p310 = pnand %p308, %p309
      %p311 = pneg %p310
      // Predicated region
      $region53: #{tpu_custom_call.1} parent=5 // pred_check
        _
      $region54: #{tpu_custom_call.1} parent=5 // pred_check_branch
        %313 = sbr.rel (%p310) target = $region56
      $region55: #{tpu_custom_call.1} parent=5 // pred_region
        %s314 = ssub.s32 %s18, 1
        %p315 = scmp.lt.s32.totalorder %s27, 1
        %s316 = scalar_select %p315, %s27, 1
        %p317 = scmp.lt.s32.totalorder %s28, 1
        %s318 = scalar_select %p317, %s28, 1
        %s319 = smul.addr %s316, 2
        %s320 = sadd.s32 %s318, %s319
        %s321 = smul.addr %s320, 4
        %s322 = scalar_lea.vmem %s0, %s321
        %p323 = pneg %p58
        %p324 = pneg %p55
        %p325 = pneg %p79
        %p326 = pneg %p76
        %p327 = pneg %p100
        %p328 = pneg %p97
        %p329 = pneg %p121
        %p330 = pneg %p118
        %p331 = pneg %p142
        %p332 = pneg %p139
        %p333 = pneg %p163
        %p334 = pneg %p160
        %p335 = pneg %p184
        %p336 = pneg %p181
        %p337 = pneg %p205
        %p338 = pneg %p202
        %p339 = pneg %p226
        %p340 = pneg %p223
        %p341 = pneg %p254
        %p342 = pneg %p251
        %s343 = sand.u32 %s241, 1
        %s344 = scalar_lea.sflag [#allocation3], %s343
        %s345 = sand.u32 %s241, 1
        %s346 = smul.addr %s345, 64
        %s347 = scalar_lea.vmem [#allocation2], %s346
        %p348 = scmp.lt.s32.totalorder %s27, 1
        %s349 = scalar_select %p348, %s27, 1
        %p350 = scmp.lt.s32.totalorder %s28, 1
        %s351 = scalar_select %p350, %s28, 1
        %s352 = smul.addr %s349, 2
        %s353 = sadd.s32 %s351, %s352
        %s354 = smul.addr %s353, 4
        %s355 = scalar_lea.vmem %s0, %s354
        %v357 = vld [vmem:[%s355] sm:$0x7]
        %v358 = vpack.c.bf16 %v357, %v357
        %v359 = vld [vmem:[%s1] sm:$0xf]
        %v360 = vld [vmem:[%s1 + $0x4] sm:$0xf]
        %v361 = vld [vmem:[%s1 + $0x8] sm:$0xf]
        %v362 = vld [vmem:[%s1 + $0xc] sm:$0xf]
        %v363 = vld [vmem:[%s1 + $0x10] sm:$0xf]
        %v364 = vld [vmem:[%s1 + $0x14] sm:$0xf]
        %v365 = vld [vmem:[%s1 + $0x18] sm:$0xf]
        %v366 = vld [vmem:[%s1 + $0x1c] sm:$0xf]
        %v375 = vunpack.c.l.b16 %v359
        %v376 = vunpack.c.l.b16 %v360
        %v377 = vunpack.c.l.b16 %v361
        %v378 = vunpack.c.l.b16 %v362
        %v379 = vunpack.c.l.b16 %v363
        %v380 = vunpack.c.l.b16 %v364
        %v381 = vunpack.c.l.b16 %v365
        %v382 = vunpack.c.l.b16 %v366
        %v383 = vpack.c.b16 %v376, %v375
        %v384 = vpack.c.b16 %v378, %v377
        %v385 = vpack.c.b16 %v380, %v379
        %v386 = vpack.c.b16 %v382, %v381
        %vm387 = vcmask 23552
        %v389 = vsel %vm387, %v383, 0
        %v392 = vsel %vm387, %v384, 0
        %v395 = vsel %vm387, %v385, 0
        %v398 = vsel %vm387, %v386, 0
        %vm400 = vcmask 1040384
        %vm401 = vcmask 1041408
        %v402 = vsel %vm400, 4294967295, 65535
        %v403 = vsel %vm401, %v402, 0
        %v405 = vand.u32 %v358, %v403
        %407 = vmatprep.subr.bf16.mxu0 0
        %408 = vmatpush1.bf16.msra.mxu0 %v405
        %409 = vmatprep.subr.bf16.mxu0 0
        %410 = vmatpush1.bf16.msra.mxu0 0
        %411 = vmatprep.subr.bf16.mxu0 0
        %412 = vmatpush1.bf16.msra.mxu0 0
        %413 = vmatprep.subr.bf16.mxu0 0
        %414 = vmatpush1.bf16.msra.mxu0 0
        %415 = vmatprep.subr.bf16.mxu0 0
        %416 = vmatpush1.bf16.msra.mxu0 0
        %417 = vmatprep.subr.bf16.mxu0 0
        %418 = vmatpush1.bf16.msra.mxu0 0
        %419 = vmatprep.subr.bf16.mxu0 0
        %420 = vmatpush1.bf16.msra.mxu0 0
        %421 = vmatprep.subr.bf16.mxu0 0
        %422 = vmatpush1.bf16.msra.mxu0 0
        %423 = vmatprep.subr.bf16.mxu0 0
        %424 = vmatpush1.bf16.msra.mxu0 0
        %425 = vmatprep.subr.bf16.mxu0 0
        %426 = vmatpush1.bf16.msra.mxu0 0
        %427 = vmatprep.subr.bf16.mxu0 0
        %428 = vmatpush1.bf16.msra.mxu0 0
        %429 = vmatprep.subr.bf16.mxu0 0
        %430 = vmatpush1.bf16.msra.mxu0 0
        %431 = vmatprep.subr.bf16.mxu0 0
        %432 = vmatpush1.bf16.msra.mxu0 0
        %433 = vmatprep.subr.bf16.mxu0 0
        %434 = vmatpush1.bf16.msra.mxu0 0
        %435 = vmatprep.subr.bf16.mxu0 0
        %436 = vmatpush1.bf16.msra.mxu0 0
        %437 = vmatprep.subr.bf16.mxu0 0
        %438 = vmatpush1.bf16.msra.mxu0 0
        %439 = vmatprep.mubr.bf16.mxu0 0
        %440 = vmatmul.mubr.bf16.gmra.mrb[0].mxu0 %v389
        %v441 = vpop.f32.mrb[0].mxu0
        %v442 = vadd.f32 0.0, %v441
        %v443 = vpop.f32.mrb[0].mxu0
        %v444 = vpop.f32.mrb[0].mxu0
        %v445 = vadd.f32 0.0, %v444
        %v446 = vpop.f32.mrb[0].mxu0
        %447 = vmatprep.mubr.bf16.mxu0 0
        %448 = vmatmul.mubr.bf16.gmra.mrb[0].mxu0 %v392
        %v449 = vpop.f32.mrb[0].mxu0
        %v450 = vadd.f32 0.0, %v449
        %v451 = vpop.f32.mrb[0].mxu0
        %v452 = vpop.f32.mrb[0].mxu0
        %v453 = vadd.f32 0.0, %v452
        %v454 = vpop.f32.mrb[0].mxu0
        %455 = vmatprep.mubr.bf16.mxu0 0
        %456 = vmatmul.mubr.bf16.gmra.mrb[0].mxu0 %v395
        %v457 = vpop.f32.mrb[0].mxu0
        %v458 = vadd.f32 0.0, %v457
        %v459 = vpop.f32.mrb[0].mxu0
        %v460 = vpop.f32.mrb[0].mxu0
        %v461 = vadd.f32 0.0, %v460
        %v462 = vpop.f32.mrb[0].mxu0
        %463 = vmatprep.mubr.bf16.mxu0 0
        %464 = vmatmul.mubr.bf16.gmra.mrb[0].mxu0 %v398
        %v465 = vpop.f32.mrb[0].mxu0
        %v466 = vadd.f32 0.0, %v465
        %v467 = vpop.f32.mrb[0].mxu0
        %v468 = vpop.f32.mrb[0].mxu0
        %v469 = vadd.f32 0.0, %v468
        %v470 = vpop.f32.mrb[0].mxu0
        %471 = vdwg.mxu0
        %v472 = vld [vmem:[%s2] sm:$0xff]
        %v473 = vld [vmem:[%s2 + $0x8] sm:$0xff]
        %v474 = vld [vmem:[%s2 + $0x10] sm:$0xff]
        %v475 = vld [vmem:[%s2 + $0x18] sm:$0xff]
        %477 = vset.pattern.permute.xlu0 0
        %478 = vperm.xlu0 %477, %v472
        %v479 = vpop.permute.xlu0 %478
        %482 = vset.pattern.permute.xlu0 0
        %483 = vperm.xlu0 %482, %v473
        %v484 = vpop.permute.xlu0 %483
        %487 = vset.pattern.permute.xlu0 0
        %488 = vperm.xlu0 %487, %v474
        %v489 = vpop.permute.xlu0 %488
        %492 = vset.pattern.permute.xlu0 0
        %493 = vperm.xlu0 %492, %v475
        %v494 = vpop.permute.xlu0 %493
        %v496 = vadd.f32 %v442, %v479
        %v497 = vadd.f32 %v445, %v484
        %v498 = vadd.f32 %v450, %v489
        %v499 = vadd.f32 %v453, %v494
        %v500 = vmax.f32 %v496, 0.0
        %v501 = vmax.f32 %v497, 0.0
        %v502 = vmax.f32 %v498, 0.0
        %v503 = vmax.f32 %v499, 0.0
        %v504 = vld [vmem:[%s3] sm:$0xf]
        %v505 = vld [vmem:[%s3 + $0x4] sm:$0xf]
        %v506 = vld [vmem:[%s3 + $0x8] sm:$0xf]
        %v507 = vld [vmem:[%s3 + $0xc] sm:$0xf]
        %v508 = vpack.c.bf16 %v501, %v500
        %v509 = vpack.c.bf16 %v503, %v502
        %v514 = vunpack.c.l.b16 %v504
        %v515 = vunpack.c.l.b16 %v505
        %v516 = vunpack.c.l.b16 %v506
        %v517 = vunpack.c.l.b16 %v507
        %v518 = vpack.c.b16 %v515, %v514
        %v519 = vpack.c.b16 %v517, %v516
        %vm520 = vcmask 261120
        %v522 = vsel %vm520, %v518, 0
        %v525 = vsel %vm520, %v519, 0
        %527 = vmatprep.subr.bf16.mxu0 0
        %528 = vmatpush1.bf16.msra.mxu0 %v508
        %529 = vmatprep.subr.bf16.mxu0 0
        %530 = vmatpush1.bf16.msra.mxu0 %v509
        %531 = vmatprep.subr.bf16.mxu0 0
        %532 = vmatpush1.bf16.msra.mxu0 0
        %533 = vmatprep.subr.bf16.mxu0 0
        %534 = vmatpush1.bf16.msra.mxu0 0
        %535 = vmatprep.subr.bf16.mxu0 0
        %536 = vmatpush1.bf16.msra.mxu0 0
        %537 = vmatprep.subr.bf16.mxu0 0
        %538 = vmatpush1.bf16.msra.mxu0 0
        %539 = vmatprep.subr.bf16.mxu0 0
        %540 = vmatpush1.bf16.msra.mxu0 0
        %541 = vmatprep.subr.bf16.mxu0 0
        %542 = vmatpush1.bf16.msra.mxu0 0
        %543 = vmatprep.subr.bf16.mxu0 0
        %544 = vmatpush1.bf16.msra.mxu0 0
        %545 = vmatprep.subr.bf16.mxu0 0
        %546 = vmatpush1.bf16.msra.mxu0 0
        %547 = vmatprep.subr.bf16.mxu0 0
        %548 = vmatpush1.bf16.msra.mxu0 0
        %549 = vmatprep.subr.bf16.mxu0 0
        %550 = vmatpush1.bf16.msra.mxu0 0
        %551 = vmatprep.subr.bf16.mxu0 0
        %552 = vmatpush1.bf16.msra.mxu0 0
        %553 = vmatprep.subr.bf16.mxu0 0
        %554 = vmatpush1.bf16.msra.mxu0 0
        %555 = vmatprep.subr.bf16.mxu0 0
        %556 = vmatpush1.bf16.msra.mxu0 0
        %557 = vmatprep.subr.bf16.mxu0 0
        %558 = vmatpush1.bf16.msra.mxu0 0
        %559 = vmatprep.mubr.bf16.mxu0 0
        %560 = vmatmul.mubr.bf16.gmra.mrb[0].mxu0 %v522
        %v561 = vpop.f32.mrb[0].mxu0
        %v562 = vadd.f32 %v458, %v561
        %v563 = vpop.f32.mrb[0].mxu0
        %v564 = vpop.f32.mrb[0].mxu0
        %v565 = vadd.f32 %v461, %v564
        %v566 = vpop.f32.mrb[0].mxu0
        %567 = vmatprep.mubr.bf16.mxu0 0
        %568 = vmatmul.mubr.bf16.gmra.mrb[0].mxu0 %v525
        %v569 = vpop.f32.mrb[0].mxu0
        %v570 = vadd.f32 %v466, %v569
        %v571 = vpop.f32.mrb[0].mxu0
        %v572 = vpop.f32.mrb[0].mxu0
        %v573 = vadd.f32 %v469, %v572
        %v574 = vpop.f32.mrb[0].mxu0
        %575 = vdwg.mxu0
        %v576 = vld [vmem:[%s4] sm:$0xff]
        %v577 = vld [vmem:[%s4 + $0x8] sm:$0xff]
        %v578 = vld [vmem:[%s4 + $0x10] sm:$0xff]
        %v579 = vld [vmem:[%s4 + $0x18] sm:$0xff]
        %581 = vset.pattern.permute.xlu0 0
        %582 = vperm.xlu0 %581, %v576
        %v583 = vpop.permute.xlu0 %582
        %586 = vset.pattern.permute.xlu0 0
        %587 = vperm.xlu0 %586, %v577
        %v588 = vpop.permute.xlu0 %587
        %591 = vset.pattern.permute.xlu0 0
        %592 = vperm.xlu0 %591, %v578
        %v593 = vpop.permute.xlu0 %592
        %596 = vset.pattern.permute.xlu0 0
        %597 = vperm.xlu0 %596, %v579
        %v598 = vpop.permute.xlu0 %597
        %v600 = vadd.f32 %v562, %v583
        %v601 = vadd.f32 %v565, %v588
        %v602 = vadd.f32 %v570, %v593
        %v603 = vadd.f32 %v573, %v598
        %v604 = vmax.f32 %v600, 0.0
        %v605 = vmax.f32 %v601, 0.0
        %v606 = vmax.f32 %v602, 0.0
        %v607 = vmax.f32 %v603, 0.0
        %v608 = vpack.c.bf16 %v605, %v604
        %v609 = vpack.c.bf16 %v607, %v606
        %v610 = vld [vmem:[%s5] sm:$0xf]
        %v611 = vld [vmem:[%s5 + $0x4] sm:$0xf]
        %v612 = vld [vmem:[%s5 + $0x8] sm:$0xf]
        %v613 = vld [vmem:[%s5 + $0xc] sm:$0xf]
        %v614 = vld [vmem:[%s5 + $0x10] sm:$0xf]
        %v615 = vld [vmem:[%s5 + $0x14] sm:$0xf]
        %v616 = vld [vmem:[%s5 + $0x18] sm:$0xf]
        %v617 = vld [vmem:[%s5 + $0x1c] sm:$0xf]
        %v618 = vld [vmem:[%s5 + $0x20] sm:$0xf]
        %v619 = vld [vmem:[%s5 + $0x24] sm:$0xf]
        %v620 = vld [vmem:[%s5 + $0x28] sm:$0xf]
        %v621 = vld [vmem:[%s5 + $0x2c] sm:$0xf]
        %v622 = vld [vmem:[%s5 + $0x30] sm:$0xf]
        %v623 = vld [vmem:[%s5 + $0x34] sm:$0xf]
        %v624 = vld [vmem:[%s5 + $0x38] sm:$0xf]
        %v625 = vld [vmem:[%s5 + $0x3c] sm:$0xf]
        %v642 = vunpack.c.l.b16 %v610
        %v643 = vunpack.c.l.b16 %v611
        %v644 = vunpack.c.l.b16 %v612
        %v645 = vunpack.c.l.b16 %v613
        %v646 = vunpack.c.l.b16 %v614
        %v647 = vunpack.c.l.b16 %v615
        %v648 = vunpack.c.l.b16 %v616
        %v649 = vunpack.c.l.b16 %v617
        %v650 = vunpack.c.l.b16 %v618
        %v651 = vunpack.c.l.b16 %v619
        %v652 = vunpack.c.l.b16 %v620
        %v653 = vunpack.c.l.b16 %v621
        %v654 = vunpack.c.l.b16 %v622
        %v655 = vunpack.c.l.b16 %v623
        %v656 = vunpack.c.l.b16 %v624
        %v657 = vunpack.c.l.b16 %v625
        %v658 = vpack.c.b16 %v643, %v642
        %v659 = vpack.c.b16 %v645, %v644
        %v660 = vpack.c.b16 %v647, %v646
        %v661 = vpack.c.b16 %v649, %v648
        %v662 = vpack.c.b16 %v651, %v650
        %v663 = vpack.c.b16 %v653, %v652
        %v664 = vpack.c.b16 %v655, %v654
        %v665 = vpack.c.b16 %v657, %v656
        %v667 = vsel %vm520, %v658, 0
        %v670 = vsel %vm520, %v659, 0
        %v673 = vsel %vm520, %v660, 0
        %v676 = vsel %vm520, %v661, 0
        %v679 = vsel %vm520, %v662, 0
        %v682 = vsel %vm520, %v663, 0
        %v685 = vsel %vm520, %v664, 0
        %v688 = vsel %vm520, %v665, 0
        %690 = vmatprep.subr.bf16.mxu0 0
        %691 = vmatpush1.bf16.msra.mxu0 %v608
        %692 = vmatprep.subr.bf16.mxu0 0
        %693 = vmatpush1.bf16.msra.mxu0 %v609
        %694 = vmatprep.subr.bf16.mxu0 0
        %695 = vmatpush1.bf16.msra.mxu0 0
        %696 = vmatprep.subr.bf16.mxu0 0
        %697 = vmatpush1.bf16.msra.mxu0 0
        %698 = vmatprep.subr.bf16.mxu0 0
        %699 = vmatpush1.bf16.msra.mxu0 0
        %700 = vmatprep.subr.bf16.mxu0 0
        %701 = vmatpush1.bf16.msra.mxu0 0
        %702 = vmatprep.subr.bf16.mxu0 0
        %703 = vmatpush1.bf16.msra.mxu0 0
        %704 = vmatprep.subr.bf16.mxu0 0
        %705 = vmatpush1.bf16.msra.mxu0 0
        %706 = vmatprep.subr.bf16.mxu0 0
        %707 = vmatpush1.bf16.msra.mxu0 0
        %708 = vmatprep.subr.bf16.mxu0 0
        %709 = vmatpush1.bf16.msra.mxu0 0
        %710 = vmatprep.subr.bf16.mxu0 0
        %711 = vmatpush1.bf16.msra.mxu0 0
        %712 = vmatprep.subr.bf16.mxu0 0
        %713 = vmatpush1.bf16.msra.mxu0 0
        %714 = vmatprep.subr.bf16.mxu0 0
        %715 = vmatpush1.bf16.msra.mxu0 0
        %716 = vmatprep.subr.bf16.mxu0 0
        %717 = vmatpush1.bf16.msra.mxu0 0
        %718 = vmatprep.subr.bf16.mxu0 0
        %719 = vmatpush1.bf16.msra.mxu0 0
        %720 = vmatprep.subr.bf16.mxu0 0
        %721 = vmatpush1.bf16.msra.mxu0 0
        %722 = vmatprep.mubr.bf16.mxu0 0
        %723 = vmatmul.mubr.bf16.gmra.mrb[0].mxu0 %v667
        %v724 = vpop.f32.mrb[0].mxu0
        %v725 = vadd.f32 0.0, %v724
        %v726 = vpop.f32.mrb[0].mxu0
        %v727 = vpop.f32.mrb[0].mxu0
        %v728 = vadd.f32 0.0, %v727
        %v729 = vpop.f32.mrb[0].mxu0
        %730 = vmatprep.mubr.bf16.mxu0 0
        %731 = vmatmul.mubr.bf16.gmra.mrb[0].mxu0 %v670
        %v732 = vpop.f32.mrb[0].mxu0
        %v733 = vadd.f32 0.0, %v732
        %v734 = vpop.f32.mrb[0].mxu0
        %v735 = vpop.f32.mrb[0].mxu0
        %v736 = vadd.f32 0.0, %v735
        %v737 = vpop.f32.mrb[0].mxu0
        %738 = vmatprep.mubr.bf16.mxu0 0
        %739 = vmatmul.mubr.bf16.gmra.mrb[0].mxu0 %v673
        %v740 = vpop.f32.mrb[0].mxu0
        %v741 = vadd.f32 0.0, %v740
        %v742 = vpop.f32.mrb[0].mxu0
        %v743 = vpop.f32.mrb[0].mxu0
        %v744 = vadd.f32 0.0, %v743
        %v745 = vpop.f32.mrb[0].mxu0
        %746 = vmatprep.mubr.bf16.mxu0 0
        %747 = vmatmul.mubr.bf16.gmra.mrb[0].mxu0 %v676
        %v748 = vpop.f32.mrb[0].mxu0
        %v749 = vadd.f32 0.0, %v748
        %v750 = vpop.f32.mrb[0].mxu0
        %v751 = vpop.f32.mrb[0].mxu0
        %v752 = vadd.f32 0.0, %v751
        %v753 = vpop.f32.mrb[0].mxu0
        %754 = vmatprep.mubr.bf16.mxu0 0
        %755 = vmatmul.mubr.bf16.gmra.mrb[0].mxu0 %v679
        %v756 = vpop.f32.mrb[0].mxu0
        %v757 = vadd.f32 0.0, %v756
        %v758 = vpop.f32.mrb[0].mxu0
        %v759 = vpop.f32.mrb[0].mxu0
        %v760 = vadd.f32 0.0, %v759
        %v761 = vpop.f32.mrb[0].mxu0
        %762 = vmatprep.mubr.bf16.mxu0 0
        %763 = vmatmul.mubr.bf16.gmra.mrb[0].mxu0 %v682
        %v764 = vpop.f32.mrb[0].mxu0
        %v765 = vadd.f32 0.0, %v764
        %v766 = vpop.f32.mrb[0].mxu0
        %v767 = vpop.f32.mrb[0].mxu0
        %v768 = vadd.f32 0.0, %v767
        %v769 = vpop.f32.mrb[0].mxu0
        %770 = vmatprep.mubr.bf16.mxu0 0
        %771 = vmatmul.mubr.bf16.gmra.mrb[0].mxu0 %v685
        %v772 = vpop.f32.mrb[0].mxu0
        %v773 = vadd.f32 0.0, %v772
        %v774 = vpop.f32.mrb[0].mxu0
        %v775 = vpop.f32.mrb[0].mxu0
        %v776 = vadd.f32 0.0, %v775
        %v777 = vpop.f32.mrb[0].mxu0
        %778 = vmatprep.mubr.bf16.mxu0 0
        %779 = vmatmul.mubr.bf16.gmra.mrb[0].mxu0 %v688
        %v780 = vpop.f32.mrb[0].mxu0
        %v781 = vadd.f32 0.0, %v780
        %v782 = vpop.f32.mrb[0].mxu0
        %v783 = vpop.f32.mrb[0].mxu0
        %v784 = vadd.f32 0.0, %v783
        %v785 = vpop.f32.mrb[0].mxu0
        %786 = vdwg.mxu0
        %v787 = vld [vmem:[%s6] sm:$0xff]
        %v788 = vld [vmem:[%s6 + $0x8] sm:$0xff]
        %v789 = vld [vmem:[%s6 + $0x10] sm:$0xff]
        %v790 = vld [vmem:[%s6 + $0x18] sm:$0xff]
        %v791 = vld [vmem:[%s6 + $0x20] sm:$0xff]
        %v792 = vld [vmem:[%s6 + $0x28] sm:$0xff]
        %v793 = vld [vmem:[%s6 + $0x30] sm:$0xff]
        %v794 = vld [vmem:[%s6 + $0x38] sm:$0xff]
        %796 = vset.pattern.permute.xlu0 0
        %797 = vperm.xlu0 %796, %v787
        %v798 = vpop.permute.xlu0 %797
        %801 = vset.pattern.permute.xlu0 0
        %802 = vperm.xlu0 %801, %v788
        %v803 = vpop.permute.xlu0 %802
        %806 = vset.pattern.permute.xlu0 0
        %807 = vperm.xlu0 %806, %v789
        %v808 = vpop.permute.xlu0 %807
        %811 = vset.pattern.permute.xlu0 0
        %812 = vperm.xlu0 %811, %v790
        %v813 = vpop.permute.xlu0 %812
        %816 = vset.pattern.permute.xlu0 0
        %817 = vperm.xlu0 %816, %v791
        %v818 = vpop.permute.xlu0 %817
        %821 = vset.pattern.permute.xlu0 0
        %822 = vperm.xlu0 %821, %v792
        %v823 = vpop.permute.xlu0 %822
        %826 = vset.pattern.permute.xlu0 0
        %827 = vperm.xlu0 %826, %v793
        %v828 = vpop.permute.xlu0 %827
        %831 = vset.pattern.permute.xlu0 0
        %832 = vperm.xlu0 %831, %v794
        %v833 = vpop.permute.xlu0 %832
        %v835 = vadd.f32 %v725, %v798
        %v836 = vadd.f32 %v728, %v803
        %v837 = vadd.f32 %v733, %v808
        %v838 = vadd.f32 %v736, %v813
        %v839 = vadd.f32 %v741, %v818
        %v840 = vadd.f32 %v744, %v823
        %v841 = vadd.f32 %v749, %v828
        %v842 = vadd.f32 %v752, %v833
        %v843 = vmax.f32 %v835, 0.0
        %v844 = vmax.f32 %v836, 0.0
        %v845 = vmax.f32 %v837, 0.0
        %v846 = vmax.f32 %v838, 0.0
        %v847 = vmax.f32 %v839, 0.0
        %v848 = vmax.f32 %v840, 0.0
        %v849 = vmax.f32 %v841, 0.0
        %v850 = vmax.f32 %v842, 0.0
        %v851 = vld [vmem:[%s7] sm:$0xf]
        %v852 = vld [vmem:[%s7 + $0x4] sm:$0xf]
        %v853 = vld [vmem:[%s7 + $0x8] sm:$0xf]
        %v854 = vld [vmem:[%s7 + $0xc] sm:$0xf]
        %v855 = vld [vmem:[%s7 + $0x10] sm:$0xf]
        %v856 = vld [vmem:[%s7 + $0x14] sm:$0xf]
        %v857 = vld [vmem:[%s7 + $0x18] sm:$0xf]
        %v858 = vld [vmem:[%s7 + $0x1c] sm:$0xf]
        %v859 = vpack.c.bf16 %v844, %v843
        %v860 = vpack.c.bf16 %v846, %v845
        %v861 = vpack.c.bf16 %v848, %v847
        %v862 = vpack.c.bf16 %v850, %v849
        %v871 = vunpack.c.l.b16 %v851
        %v872 = vunpack.c.l.b16 %v852
        %v873 = vunpack.c.l.b16 %v853
        %v874 = vunpack.c.l.b16 %v854
        %v875 = vunpack.c.l.b16 %v855
        %v876 = vunpack.c.l.b16 %v856
        %v877 = vunpack.c.l.b16 %v857
        %v878 = vunpack.c.l.b16 %v858
        %v879 = vpack.c.b16 %v872, %v871
        %v880 = vpack.c.b16 %v874, %v873
        %v881 = vpack.c.b16 %v876, %v875
        %v882 = vpack.c.b16 %v878, %v877
        %vm883 = vcmask 523264
        %v885 = vsel %vm883, %v879, 0
        %v888 = vsel %vm883, %v880, 0
        %v891 = vsel %vm883, %v881, 0
        %v894 = vsel %vm883, %v882, 0
        %896 = vmatprep.subr.bf16.mxu0 0
        %897 = vmatpush1.bf16.msra.mxu0 %v859
        %898 = vmatprep.subr.bf16.mxu0 0
        %899 = vmatpush1.bf16.msra.mxu0 %v860
        %900 = vmatprep.subr.bf16.mxu0 0
        %901 = vmatpush1.bf16.msra.mxu0 %v861
        %902 = vmatprep.subr.bf16.mxu0 0
        %903 = vmatpush1.bf16.msra.mxu0 %v862
        %904 = vmatprep.subr.bf16.mxu0 0
        %905 = vmatpush1.bf16.msra.mxu0 0
        %906 = vmatprep.subr.bf16.mxu0 0
        %907 = vmatpush1.bf16.msra.mxu0 0
        %908 = vmatprep.subr.bf16.mxu0 0
        %909 = vmatpush1.bf16.msra.mxu0 0
        %910 = vmatprep.subr.bf16.mxu0 0
        %911 = vmatpush1.bf16.msra.mxu0 0
        %912 = vmatprep.subr.bf16.mxu0 0
        %913 = vmatpush1.bf16.msra.mxu0 0
        %914 = vmatprep.subr.bf16.mxu0 0
        %915 = vmatpush1.bf16.msra.mxu0 0
        %916 = vmatprep.subr.bf16.mxu0 0
        %917 = vmatpush1.bf16.msra.mxu0 0
        %918 = vmatprep.subr.bf16.mxu0 0
        %919 = vmatpush1.bf16.msra.mxu0 0
        %920 = vmatprep.subr.bf16.mxu0 0
        %921 = vmatpush1.bf16.msra.mxu0 0
        %922 = vmatprep.subr.bf16.mxu0 0
        %923 = vmatpush1.bf16.msra.mxu0 0
        %924 = vmatprep.subr.bf16.mxu0 0
        %925 = vmatpush1.bf16.msra.mxu0 0
        %926 = vmatprep.subr.bf16.mxu0 0
        %927 = vmatpush1.bf16.msra.mxu0 0
        %928 = vmatprep.mubr.bf16.mxu0 0
        %929 = vmatmul.mubr.bf16.gmra.mrb[0].mxu0 %v885
        %v930 = vpop.f32.mrb[0].mxu0
        %v931 = vadd.f32 %v757, %v930
        %v932 = vpop.f32.mrb[0].mxu0
        %v933 = vpop.f32.mrb[0].mxu0
        %v934 = vadd.f32 %v760, %v933
        %v935 = vpop.f32.mrb[0].mxu0
        %936 = vmatprep.mubr.bf16.mxu0 0
        %937 = vmatmul.mubr.bf16.gmra.mrb[0].mxu0 %v888
        %v938 = vpop.f32.mrb[0].mxu0
        %v939 = vadd.f32 %v765, %v938
        %v940 = vpop.f32.mrb[0].mxu0
        %v941 = vpop.f32.mrb[0].mxu0
        %v942 = vadd.f32 %v768, %v941
        %v943 = vpop.f32.mrb[0].mxu0
        %944 = vmatprep.mubr.bf16.mxu0 0
        %945 = vmatmul.mubr.bf16.gmra.mrb[0].mxu0 %v891
        %v946 = vpop.f32.mrb[0].mxu0
        %v947 = vadd.f32 %v773, %v946
        %v948 = vpop.f32.mrb[0].mxu0
        %v949 = vpop.f32.mrb[0].mxu0
        %v950 = vadd.f32 %v776, %v949
        %v951 = vpop.f32.mrb[0].mxu0
        %952 = vmatprep.mubr.bf16.mxu0 0
        %953 = vmatmul.mubr.bf16.gmra.mrb[0].mxu0 %v894
        %v954 = vpop.f32.mrb[0].mxu0
        %v955 = vadd.f32 %v781, %v954
        %v956 = vpop.f32.mrb[0].mxu0
        %v957 = vpop.f32.mrb[0].mxu0
        %v958 = vadd.f32 %v784, %v957
        %v959 = vpop.f32.mrb[0].mxu0
        %960 = vdwg.mxu0
        %v961 = vld [vmem:[%s8] sm:$0xff]
        %v962 = vld [vmem:[%s8 + $0x8] sm:$0xff]
        %v963 = vld [vmem:[%s8 + $0x10] sm:$0xff]
        %v964 = vld [vmem:[%s8 + $0x18] sm:$0xff]
        %v965 = vld [vmem:[%s8 + $0x20] sm:$0xff]
        %v966 = vld [vmem:[%s8 + $0x28] sm:$0xff]
        %v967 = vld [vmem:[%s8 + $0x30] sm:$0xff]
        %v968 = vld [vmem:[%s8 + $0x38] sm:$0xff]
        %970 = vset.pattern.permute.xlu0 0
        %971 = vperm.xlu0 %970, %v961
        %v972 = vpop.permute.xlu0 %971
        %975 = vset.pattern.permute.xlu0 0
        %976 = vperm.xlu0 %975, %v962
        %v977 = vpop.permute.xlu0 %976
        %980 = vset.pattern.permute.xlu0 0
        %981 = vperm.xlu0 %980, %v963
        %v982 = vpop.permute.xlu0 %981
        %985 = vset.pattern.permute.xlu0 0
        %986 = vperm.xlu0 %985, %v964
        %v987 = vpop.permute.xlu0 %986
        %990 = vset.pattern.permute.xlu0 0
        %991 = vperm.xlu0 %990, %v965
        %v992 = vpop.permute.xlu0 %991
        %995 = vset.pattern.permute.xlu0 0
        %996 = vperm.xlu0 %995, %v966
        %v997 = vpop.permute.xlu0 %996
        %1000 = vset.pattern.permute.xlu0 0
        %1001 = vperm.xlu0 %1000, %v967
        %v1002 = vpop.permute.xlu0 %1001
        %1005 = vset.pattern.permute.xlu0 0
        %1006 = vperm.xlu0 %1005, %v968
        %v1007 = vpop.permute.xlu0 %1006
        %v1009 = vadd.f32 %v931, %v972
        %v1010 = vadd.f32 %v934, %v977
        %v1011 = vadd.f32 %v939, %v982
        %v1012 = vadd.f32 %v942, %v987
        %v1013 = vadd.f32 %v947, %v992
        %v1014 = vadd.f32 %v950, %v997
        %v1015 = vadd.f32 %v955, %v1002
        %v1016 = vadd.f32 %v958, %v1007
        %v1017 = vmax.f32 %v1009, 0.0
        %v1018 = vmax.f32 %v1010, 0.0
        %v1019 = vmax.f32 %v1011, 0.0
        %v1020 = vmax.f32 %v1012, 0.0
        %v1021 = vmax.f32 %v1013, 0.0
        %v1022 = vmax.f32 %v1014, 0.0
        %v1023 = vmax.f32 %v1015, 0.0
        %v1024 = vmax.f32 %v1016, 0.0
        %1025 = vst [vmem:[%s347] sm:$0xff] %v1017
        %1026 = vst [vmem:[%s347 + $0x8] sm:$0xff] %v1018
        %1027 = vst [vmem:[%s347 + $0x10] sm:$0xff] %v1019
        %1028 = vst [vmem:[%s347 + $0x18] sm:$0xff] %v1020
        %1029 = vst [vmem:[%s347 + $0x20] sm:$0xff] %v1021
        %1030 = vst [vmem:[%s347 + $0x28] sm:$0xff] %v1022
        %1031 = vst [vmem:[%s347 + $0x30] sm:$0xff] %v1023
        %1032 = vst [vmem:[%s347 + $0x38] sm:$0xff] %v1024
        %s1033 = sand.u32 %s241, 1
        %s1034 = scalar_lea.sflag [#allocation3], %s1033
        %s1035 = sand.u32 %s241, 1
        %s1036 = smul.addr %s1035, 64
        %s1037 = scalar_lea.vmem [#allocation2], %s1036
        // Predicated region
        $region57: #{tpu_custom_call.1} parent=55 // pred_check
          %p1038 = pneg %p251
        $region58: #{tpu_custom_call.1} parent=55 // pred_check_branch
          %1040 = sbr.rel (%p1038) target = $region60
        $region59: #{tpu_custom_call.1} parent=55 // pred_region
          %s1042 = ssub.s32 1024, 1024
          %1043 = vsyncadd %s1034, %s1042
          %s1044 = smul.addr %s27, 16
          %s1045 = sadd.s32 %s28, %s1044
          %s1046 = smul.addr %s1045, 128
          %s1047 = scalar_lea.hbm %s9, %s1046
          %s1048 = sshll.u32 %s1037, 4
          %s1049 = int_to_ptr.vmem [resolvable:$true] %s1048
          %1054 = dma.vmem_to_hbm [thread:$0]  %s1049, 1024, %s1047, %s1034, 128, 256, 8
        $region60: #{tpu_custom_call.1} parent=55 // pred_fallthru
          _
      $region56: #{tpu_custom_call.1} parent=5 // pred_fallthru
        _
      %p1055 = scmp.le.s32.totalorder 2, %s18
      // Predicated region
      $region61: #{tpu_custom_call.1} parent=5 // pred_check
        %p1056 = pneg %p1055
      $region62: #{tpu_custom_call.1} parent=5 // pred_check_branch
        %1058 = sbr.rel (%p1056) target = $region64
      $region63: #{tpu_custom_call.1} parent=5 // pred_region
        %s1059 = ssub.s32 %s18, 2
        // Predicated region
        $region65: #{tpu_custom_call.1} parent=63 // pred_check
          %p1060 = pneg %p257
        $region66: #{tpu_custom_call.1} parent=63 // pred_check_branch
          %1062 = sbr.rel (%p1060) target = $region68
        $region67: #{tpu_custom_call.1} parent=63 // pred_region
          %s1063 = sand.u32 %s242, 1
          %s1064 = scalar_lea.sflag [#allocation3], %s1063
          %s1065 = sand.u32 %s242, 1
          %s1066 = smul.addr %s1065, 64
          %s1067 = scalar_lea.vmem [#allocation2], %s1066
          %1068 = dma.done %s1064, 1024
        $region68: #{tpu_custom_call.1} parent=63 // pred_fallthru
          _
      $region64: #{tpu_custom_call.1} parent=5 // pred_fallthru
        _
    $region6: #{tpu_custom_call.1} parent=1 // loop_footer
      %s22 = sadd.s32 1, %s18
    $region7: #{tpu_custom_call.1} parent=1 // loop_footer_branch
      %17 = sbr.rel target = $region3
    $region8: #{tpu_custom_call.1} parent=1 // loop_exit
      _
    %1069 = vsyncpa [#allocation3], 1
    %s1070 = scalar_lea.sflag [#allocation3], 1
    %1071 = vsyncpa %s1070, 1

</llo_original>
